<compile_context>
chip_gen: v5e
topology: v5e:2x2
jax: 0.10.0
libtpu: 0.0.40
codegen_flags: <defaults>
</compile_context>

<pallas_src>
import numpy as np
import jax
import jax.numpy as jnp
from jax.experimental import pallas as pl
from jax.experimental.pallas import tpu as pltpu


def make_haar_weights(channel_in: int) -> jnp.ndarray:
    """Deterministic parameter init, identical to the PyTorch __init__."""
    w = np.ones((4, 1, 2, 2), dtype=np.float32)
    w[1, 0, 0, 1] = -1.0
    w[1, 0, 1, 1] = -1.0
    w[2, 0, 1, 0] = -1.0
    w[2, 0, 1, 1] = -1.0
    w[3, 0, 1, 0] = -1.0
    w[3, 0, 0, 1] = -1.0
    w = np.concatenate([w] * channel_in, axis=0)  # (4*C, 1, 2, 2)
    return jnp.asarray(w)


def _haar_kernel(x_ref, o_ref):
    # x_ref: (1, 4, TC, TL) VMEM -- axis 1 = quadrant p (p = 2*dy + dx)
    # o_ref: (1, 4, TC, TL) VMEM -- axis 1 = Haar component k
    a = x_ref[0, 0, :, :].astype(jnp.float32)   # top-left
    b = x_ref[0, 1, :, :].astype(jnp.float32)   # top-right
    c = x_ref[0, 2, :, :].astype(jnp.float32)   # bottom-left
    d = x_ref[0, 3, :, :].astype(jnp.float32)   # bottom-right
    s0 = a + b
    s1 = a - b
    s2 = c + d
    s3 = c - d
    dt = o_ref.dtype
    o_ref[0, 0, :, :] = ((s0 + s2) * 0.25).astype(dt)   # LL
    o_ref[0, 1, :, :] = ((s1 + s3) * 0.25).astype(dt)   # HL
    o_ref[0, 2, :, :] = ((s0 - s2) * 0.25).astype(dt)   # LH
    o_ref[0, 3, :, :] = ((s1 - s3) * 0.25).astype(dt)   # HH


def _pick_tile(dim: int, quantum: int, max_tile: int) -> int:
    """Largest divisor of `dim` that is a multiple of `quantum` and <= max_tile.

    Falls back to the full dim when `dim` is not a multiple of `quantum`
    (a full-extent block always satisfies the TPU (8,128) tiling rule).
    """
    if dim % quantum != 0:
        return dim
    t = min(dim, max_tile)
    t -= t % quantum
    t = max(t, quantum)
    while dim % t != 0:
        t -= quantum
    return t


def haar_downsampling_fwd(x: jnp.ndarray, haar_weights=None, *,
                          max_tc: int = 32, max_tl: int = 2048) -> jnp.ndarray:
    """Equivalent of HaarDownsampling.forward(x, rev=False).

    `haar_weights` is accepted for interface fidelity but the kernel hard-codes
    the (frozen) Haar butterfly; all C channel copies are assumed identical.
    """
    del haar_weights  # frozen parameter; butterfly is hard-coded in the kernel
    N, C, H, W = x.shape
    H2, W2 = H // 2, W // 2
    L = H2 * W2

    # Space-to-depth glue (single XLA transpose pass over x):
    # (N,C,H,W) -> (N,C,H2,2,W2,2) -> (N, dy, dx, C, H2, W2) -> (N, 4, C, L)
    x_q = (x.reshape(N, C, H2, 2, W2, 2)
            .transpose(0, 3, 5, 1, 2, 4)
            .reshape(N, 4, C, L))

    tc = _pick_tile(C, 8, max_tc)     # sublane-dense channel tile
    tl = _pick_tile(L, 128, max_tl)   # lane-dense flattened spatial tile

    grid = (N, C // tc, L // tl)
    block = (1, 4, tc, tl)
    in_spec = pl.BlockSpec(block, lambda n, ci, li: (n, 0, ci, li))
    out_spec = pl.BlockSpec(block, lambda n, ci, li: (n, 0, ci, li))

    y_q = pl.pallas_call(
        _haar_kernel,
        out_shape=jax.ShapeDtypeStruct((N, 4, C, L), x.dtype),
        grid=grid,
        in_specs=[in_spec],
        out_specs=out_spec,
        compiler_params=pltpu.CompilerParams(
            dimension_semantics=("parallel", "parallel", "parallel")),
        cost_estimate=pl.CostEstimate(
            flops=12 * N * C * L,
            transcendentals=0,
            bytes_accessed=int(2 * x.size * jnp.dtype(x.dtype).itemsize)),
    )(x_q)

    # (N, 4, C, L) -> (N, 4*C, H2, W2): contiguous reshape, matches the
    # PyTorch reshape -> transpose(1,2) -> reshape epilogue.
    return y_q.reshape(N, 4 * C, H2, W2)


def _reference_fwd(x, haar_weights):
    """Pure-XLA reference identical to the PyTorch forward (rev=False)."""
    N, C, H, W = x.shape
    H2, W2 = H // 2, W // 2
    out = jax.lax.conv_general_dilated(
        x, haar_weights, window_strides=(2, 2), padding="VALID",
        dimension_numbers=("NCHW", "OIHW", "NCHW"),
        feature_group_count=C) / 4.0
    out = out.reshape(N, C, 4, H2, W2).transpose(0, 2, 1, 3, 4)
    return out.reshape(N, 4 * C, H2, W2)


if __name__ == "__main__":
    key = jax.random.PRNGKey(0)
    N, C, H, W = 2, 4, 16, 16
    x = jax.random.normal(key, (N, C, H, W), dtype=jnp.float32)
    haar_weights = make_haar_weights(C)  # (4*C, 1, 2, 2), frozen parameter

    # Guard the hard-coded butterfly: the frozen parameter must be the
    # standard Haar init, identical for every channel copy.
    w_np = np.asarray(haar_weights).reshape(C, 4, 4)
    expected = np.array([[1,  1,  1,  1],
                         [1, -1,  1, -1],
                         [1,  1, -1, -1],
                         [1, -1, -1,  1]], dtype=np.float32)
    assert np.array_equal(w_np, np.broadcast_to(expected, (C, 4, 4)))

    fwd = jax.jit(haar_downsampling_fwd)
    y = jax.block_until_ready(fwd(x, haar_weights))
    y_ref = jax.block_until_ready(_reference_fwd(x, haar_weights))
    assert y.shape == (N, 4 * C, H // 2, W // 2), y.shape
    assert np.allclose(np.asarray(y), np.asarray(y_ref), atol=1e-5, rtol=1e-5)

    # Second small shape exercising the multiple-of-(8,128) tile path.
    N2, C2, H2s, W2s = 2, 8, 16, 32
    x2 = jax.random.normal(jax.random.PRNGKey(1), (N2, C2, H2s, W2s), jnp.float32)
    w2 = make_haar_weights(C2)
    y2 = jax.block_until_ready(jax.jit(haar_downsampling_fwd)(x2, w2))
    y2_ref = jax.block_until_ready(_reference_fwd(x2, w2))
    assert np.allclose(np.asarray(y2), np.asarray(y2_ref), atol=1e-5, rtol=1e-5)

    print("KERNEL_OK")
</pallas_src>

<mosaic_0001>
module attributes {stable_mosaic.version = 11 : i64} {
  func.func @_haar_kernel(%arg0: i32, %arg1: i32, %arg2: i32, %arg3: memref<1x4x4x64xf32, #tpu.memory_space<vmem>>, %arg4: memref<1x4x4x64xf32, #tpu.memory_space<vmem>>) attributes {dimension_semantics = [#tpu.dimension_semantics<parallel>, #tpu.dimension_semantics<parallel>, #tpu.dimension_semantics<parallel>], iteration_bounds = array<i64: 2, 1, 1>, scalar_prefetch = 0 : i64, scratch_operands = 0 : i64, tpu.core_type = #tpu.core_type<tc>, window_params = [{transform_indices = @transform_0, window_bounds = array<i64: 1, 4, 4, 64>}, {transform_indices = @transform_1, window_bounds = array<i64: 1, 4, 4, 64>}]} {
    %c0 = arith.constant 0 : index
    %c0_0 = arith.constant 0 : index
    %c0_1 = arith.constant 0 : index
    %c0_2 = arith.constant 0 : index
    %0 = vector.load %arg3[%c0, %c0_0, %c0_1, %c0_2] : memref<1x4x4x64xf32, #tpu.memory_space<vmem>>, vector<1x1x4x64xf32>
    %1 = vector.shape_cast %0 : vector<1x1x4x64xf32> to vector<4x64xf32>
    %c0_3 = arith.constant 0 : index
    %c1 = arith.constant 1 : index
    %c0_4 = arith.constant 0 : index
    %c0_5 = arith.constant 0 : index
    %2 = vector.load %arg3[%c0_3, %c1, %c0_4, %c0_5] : memref<1x4x4x64xf32, #tpu.memory_space<vmem>>, vector<1x1x4x64xf32>
    %3 = vector.shape_cast %2 : vector<1x1x4x64xf32> to vector<4x64xf32>
    %c0_6 = arith.constant 0 : index
    %c2 = arith.constant 2 : index
    %c0_7 = arith.constant 0 : index
    %c0_8 = arith.constant 0 : index
    %4 = vector.load %arg3[%c0_6, %c2, %c0_7, %c0_8] : memref<1x4x4x64xf32, #tpu.memory_space<vmem>>, vector<1x1x4x64xf32>
    %5 = vector.shape_cast %4 : vector<1x1x4x64xf32> to vector<4x64xf32>
    %c0_9 = arith.constant 0 : index
    %c3 = arith.constant 3 : index
    %c0_10 = arith.constant 0 : index
    %c0_11 = arith.constant 0 : index
    %6 = vector.load %arg3[%c0_9, %c3, %c0_10, %c0_11] : memref<1x4x4x64xf32, #tpu.memory_space<vmem>>, vector<1x1x4x64xf32>
    %7 = vector.shape_cast %6 : vector<1x1x4x64xf32> to vector<4x64xf32>
    %8 = arith.addf %1, %3 : vector<4x64xf32>
    %9 = arith.subf %1, %3 : vector<4x64xf32>
    %10 = arith.addf %5, %7 : vector<4x64xf32>
    %11 = arith.subf %5, %7 : vector<4x64xf32>
    %12 = arith.addf %8, %10 : vector<4x64xf32>
    %cst = arith.constant 2.500000e-01 : f32
    %13 = vector.broadcast %cst : f32 to vector<4x64xf32>
    %14 = arith.mulf %12, %13 : vector<4x64xf32>
    %c0_12 = arith.constant 0 : index
    %c0_13 = arith.constant 0 : index
    %c0_14 = arith.constant 0 : index
    %c0_15 = arith.constant 0 : index
    %15 = vector.load %arg4[%c0_12, %c0_13, %c0_14, %c0_15] : memref<1x4x4x64xf32, #tpu.memory_space<vmem>>, vector<1x1x4x64xf32>
    %16 = vector.shape_cast %15 : vector<1x1x4x64xf32> to vector<4x64xf32>
    %17 = vector.shape_cast %14 : vector<4x64xf32> to vector<1x1x4x64xf32>
    tpu.vector_store %arg4[%c0_12, %c0_13, %c0_14, %c0_15], %17 {strides = array<i32>} : memref<1x4x4x64xf32, #tpu.memory_space<vmem>>, vector<1x1x4x64xf32>,
    %18 = arith.addf %9, %11 : vector<4x64xf32>
    %cst_16 = arith.constant 2.500000e-01 : f32
    %19 = vector.broadcast %cst_16 : f32 to vector<4x64xf32>
    %20 = arith.mulf %18, %19 : vector<4x64xf32>
    %c0_17 = arith.constant 0 : index
    %c1_18 = arith.constant 1 : index
    %c0_19 = arith.constant 0 : index
    %c0_20 = arith.constant 0 : index
    %21 = vector.load %arg4[%c0_17, %c1_18, %c0_19, %c0_20] : memref<1x4x4x64xf32, #tpu.memory_space<vmem>>, vector<1x1x4x64xf32>
    %22 = vector.shape_cast %21 : vector<1x1x4x64xf32> to vector<4x64xf32>
    %23 = vector.shape_cast %20 : vector<4x64xf32> to vector<1x1x4x64xf32>
    tpu.vector_store %arg4[%c0_17, %c1_18, %c0_19, %c0_20], %23 {strides = array<i32>} : memref<1x4x4x64xf32, #tpu.memory_space<vmem>>, vector<1x1x4x64xf32>,
    %24 = arith.subf %8, %10 : vector<4x64xf32>
    %cst_21 = arith.constant 2.500000e-01 : f32
    %25 = vector.broadcast %cst_21 : f32 to vector<4x64xf32>
    %26 = arith.mulf %24, %25 : vector<4x64xf32>
    %c0_22 = arith.constant 0 : index
    %c2_23 = arith.constant 2 : index
    %c0_24 = arith.constant 0 : index
    %c0_25 = arith.constant 0 : index
    %27 = vector.load %arg4[%c0_22, %c2_23, %c0_24, %c0_25] : memref<1x4x4x64xf32, #tpu.memory_space<vmem>>, vector<1x1x4x64xf32>
    %28 = vector.shape_cast %27 : vector<1x1x4x64xf32> to vector<4x64xf32>
    %29 = vector.shape_cast %26 : vector<4x64xf32> to vector<1x1x4x64xf32>
    tpu.vector_store %arg4[%c0_22, %c2_23, %c0_24, %c0_25], %29 {strides = array<i32>} : memref<1x4x4x64xf32, #tpu.memory_space<vmem>>, vector<1x1x4x64xf32>,
    %30 = arith.subf %9, %11 : vector<4x64xf32>
    %cst_26 = arith.constant 2.500000e-01 : f32
    %31 = vector.broadcast %cst_26 : f32 to vector<4x64xf32>
    %32 = arith.mulf %30, %31 : vector<4x64xf32>
    %c0_27 = arith.constant 0 : index
    %c3_28 = arith.constant 3 : index
    %c0_29 = arith.constant 0 : index
    %c0_30 = arith.constant 0 : index
    %33 = vector.load %arg4[%c0_27, %c3_28, %c0_29, %c0_30] : memref<1x4x4x64xf32, #tpu.memory_space<vmem>>, vector<1x1x4x64xf32>
    %34 = vector.shape_cast %33 : vector<1x1x4x64xf32> to vector<4x64xf32>
    %35 = vector.shape_cast %32 : vector<4x64xf32> to vector<1x1x4x64xf32>
    tpu.vector_store %arg4[%c0_27, %c3_28, %c0_29, %c0_30], %35 {strides = array<i32>} : memref<1x4x4x64xf32, #tpu.memory_space<vmem>>, vector<1x1x4x64xf32>,
    return
  }
  func.func @transform_0(%arg0: i32, %arg1: i32, %arg2: i32) -> (i32, i32, i32, i32) {
    %c0_i32 = arith.constant 0 : i32
    %c0_i32_0 = arith.constant 0 : i32
    return %arg0, %c0_i32, %arg1, %arg2 : i32, i32, i32, i32
  }
  func.func @transform_1(%arg0: i32, %arg1: i32, %arg2: i32) -> (i32, i32, i32, i32) {
    %c0_i32 = arith.constant 0 : i32
    %c0_i32_0 = arith.constant 0 : i32
    return %arg0, %c0_i32, %arg1, %arg2 : i32, i32, i32, i32
  }
}

</mosaic_0001>

<llo_original>
// kernel: haar_downsampling_fwd.1
$region0: #{haar_downsampling_fwd.1}
  #allocation0 [shape = 'u32[]', space=smem, size = 0x4, offset = 0x4, fixed_abs, tag = 'smem constant byte address 0x4 - core index']
  #allocation1 [shape = 'u32[72,128]{1,0:T(1,128)}', space=vmem, size = 0x9000, scoped, tag = 'internal scratch']
  %s0 = inlined_call_operand.vmem [shape: f32[2,4,4,64], index: 0, kind: input, shape index: {}]
  %s1 = inlined_call_operand.vmem [shape: f32[2,4,4,64], index: 1, kind: output, shape index: {}]
  %s2 = sld [smem:[#allocation0]]
  $region37: #{haar_downsampling_fwd.1} parent=0
    _
  %s4 = ssub.s32 1, %s2
  %s5 = scalar_select 0, %s4, %s2
  loop: start=0, step=1, limit=4
  $region2: #{haar_downsampling_fwd.1} parent=0 // loop_pre_header
    _
  $region3: #{haar_downsampling_fwd.1} parent=0 // loop_header
    %s7 = sphi 0, %s11
    %p8 = scmp.ge.s32.totalorder %s7, 4
    %s14 = sphi 0, %s33
    %s15 = sphi 0, %s29
    %s16 = sphi 0, %s25
    %s17 = sphi 0, %s14
    %s18 = sphi 0, %s15
    %s19 = sphi 0, %s16
    %s20 = sphi 0, %s17
    %s21 = sphi 0, %s18
    %s22 = sphi 0, %s19
    %s40 = sphi 0, %s42
    %s43 = sphi 0, %s40
    %s44 = sphi 0, %s43
    %s60 = sphi 0, %s44
    %s70 = sphi 0, %s72
    %s73 = sphi 0, %s70
    %s74 = sphi 0, %s73
    %s90 = sphi 0, %s74
  $region4: #{haar_downsampling_fwd.1} parent=0 // loop_header_branch
    %10 = sbr.rel (%p8) target = $region8
  $region5: #{haar_downsampling_fwd.1} parent=0 // loop_body
    %s12 = ssub.s32 %s7, 1
    %s13 = ssub.s32 %s7, 2
    %s23 = sadd.s32 1, %s16
    %p24 = scmp.ge.s32.totalorder %s23, 1
    %s25 = scalar_select %p24, 0, %s23
    %s26 = sadd.s32 1, %s15
    %s27 = scalar_select %p24, %s26, %s15
    %p28 = scmp.ge.s32.totalorder %s27, 1
    %s29 = scalar_select %p28, 0, %s27
    %s30 = sadd.s32 1, %s14
    %s31 = scalar_select %p28, %s30, %s14
    %p32 = scmp.ge.s32.totalorder %s31, 2
    %s33 = scalar_select %p32, 0, %s31
    %s34 = ssub.s32 %s14, %s33
    %s35 = ssub.s32 %s15, %s29
    %s36 = sor.u32 %s34, %s35
    %s37 = ssub.s32 %s16, %s25
    %s38 = sor.u32 %s36, %s37
    %p39 = scmp.eq.s32.totalorder %s38, 0
    %s41 = sadd.s32 %s40, 1
    %s42 = scalar_select %p39, %s40, %s41
    %p45 = pneg %p39
    %p46 = scmp.eq.s32.totalorder %s7, 1
    %p47 = por %p45, %p46
    %p48 = scmp.ne.s32.totalorder %s40, %s43
    %p49 = scmp.eq.s32.totalorder %s7, 0
    %p50 = por %p48, %p49
    %p51 = scmp.ne.s32.totalorder %s40, %s43
    %p52 = scmp.eq.s32.totalorder %s12, 1
    %p53 = por %p51, %p52
    %p54 = scmp.ne.s32.totalorder %s43, %s44
    %p55 = scmp.eq.s32.totalorder %s12, 0
    %p56 = por %p54, %p55
    %p57 = scmp.ne.s32.totalorder %s43, %s44
    %p58 = scmp.eq.s32.totalorder %s13, 1
    %p59 = por %p57, %p58
    %p61 = scmp.ne.s32.totalorder %s44, %s60
    %p62 = scmp.eq.s32.totalorder %s13, 0
    %p63 = por %p61, %p62
    %s64 = ssub.s32 %s14, %s33
    %s65 = ssub.s32 %s15, %s29
    %s66 = sor.u32 %s64, %s65
    %s67 = ssub.s32 %s16, %s25
    %s68 = sor.u32 %s66, %s67
    %p69 = scmp.eq.s32.totalorder %s68, 0
    %s71 = sadd.s32 %s70, 1
    %s72 = scalar_select %p69, %s70, %s71
    %p75 = pneg %p69
    %p76 = scmp.eq.s32.totalorder %s7, 1
    %p77 = por %p75, %p76
    %p78 = scmp.ne.s32.totalorder %s70, %s73
    %p79 = scmp.eq.s32.totalorder %s7, 0
    %p80 = por %p78, %p79
    %p81 = scmp.ne.s32.totalorder %s70, %s73
    %p82 = scmp.eq.s32.totalorder %s12, 1
    %p83 = por %p81, %p82
    %p84 = scmp.ne.s32.totalorder %s73, %s74
    %p85 = scmp.eq.s32.totalorder %s12, 0
    %p86 = por %p84, %p85
    %p87 = scmp.ne.s32.totalorder %s73, %s74
    %p88 = scmp.eq.s32.totalorder %s13, 1
    %p89 = por %p87, %p88
    %p91 = scmp.ne.s32.totalorder %s74, %s90
    %p92 = scmp.eq.s32.totalorder %s13, 0
    %p93 = por %p91, %p92
    %p94 = scmp.le.s32.totalorder 1, %s7
    %p95 = scmp.lt.s32.totalorder %s7, 3
    %p96 = pnand %p94, %p95
    %p97 = pneg %p96
    // Predicated region
    $region9: #{haar_downsampling_fwd.1} parent=5 // pred_check
      _
    $region10: #{haar_downsampling_fwd.1} parent=5 // pred_check_branch
      %99 = sbr.rel (%p96) target = $region12
    $region11: #{haar_downsampling_fwd.1} parent=5 // pred_region
      %s100 = ssub.s32 %s7, 1
    $region12: #{haar_downsampling_fwd.1} parent=5 // pred_fallthru
      _
    %p101 = scmp.lt.s32.totalorder %s7, 2
    // Predicated region
    $region13: #{haar_downsampling_fwd.1} parent=5 // pred_check
      %p102 = pneg %p101
    $region14: #{haar_downsampling_fwd.1} parent=5 // pred_check_branch
      %104 = sbr.rel (%p102) target = $region16
    $region15: #{haar_downsampling_fwd.1} parent=5 // pred_region
      // Predicated region
      $region17: #{haar_downsampling_fwd.1} parent=15 // pred_check
        %p105 = pneg %p50
      $region18: #{haar_downsampling_fwd.1} parent=15 // pred_check_branch
        %107 = sbr.rel (%p105) target = $region20
      $region19: #{haar_downsampling_fwd.1} parent=15 // pred_region
        %p108 = scmp.lt.s32.totalorder %s14, 1
        %s109 = scalar_select %p108, %s14, 1
        %p110 = scmp.lt.s32.totalorder %s15, 0
        %s111 = scalar_select %p110, %s15, 0
        %p112 = scmp.lt.s32.totalorder %s16, 0
        %s113 = scalar_select %p112, %s16, 0
        %s114 = sadd.s32 %s113, %s111
        %s115 = smul.addr %s109, 4
        %s116 = sadd.s32 %s114, %s115
        %s117 = smul.addr %s116, 4
        %s118 = scalar_lea.vmem %s0, %s117
      $region20: #{haar_downsampling_fwd.1} parent=15 // pred_fallthru
        _
    $region16: #{haar_downsampling_fwd.1} parent=5 // pred_fallthru
      _
    %p119 = scmp.le.s32.totalorder 1, %s7
    %p120 = scmp.lt.s32.totalorder %s7, 3
    %p121 = pnand %p119, %p120
    %p122 = pneg %p121
    // Predicated region
    $region21: #{haar_downsampling_fwd.1} parent=5 // pred_check
      _
    $region22: #{haar_downsampling_fwd.1} parent=5 // pred_check_branch
      %124 = sbr.rel (%p121) target = $region24
    $region23: #{haar_downsampling_fwd.1} parent=5 // pred_region
      %s125 = ssub.s32 %s7, 1
      %p126 = scmp.lt.s32.totalorder %s17, 1
      %s127 = scalar_select %p126, %s17, 1
      %p128 = scmp.lt.s32.totalorder %s18, 0
      %s129 = scalar_select %p128, %s18, 0
      %p130 = scmp.lt.s32.totalorder %s19, 0
      %s131 = scalar_select %p130, %s19, 0
      %s132 = sadd.s32 %s131, %s129
      %s133 = smul.addr %s127, 4
      %s134 = sadd.s32 %s132, %s133
      %s135 = smul.addr %s134, 4
      %s136 = scalar_lea.vmem %s0, %s135
      %p137 = pneg %p56
      %p138 = pneg %p53
      %p139 = pneg %p86
      %p140 = pneg %p83
      %p141 = scmp.lt.s32.totalorder %s17, 1
      %s142 = scalar_select %p141, %s17, 1
      %p143 = scmp.lt.s32.totalorder %s18, 0
      %s144 = scalar_select %p143, %s18, 0
      %p145 = scmp.lt.s32.totalorder %s19, 0
      %s146 = scalar_select %p145, %s19, 0
      %s147 = sadd.s32 %s146, %s144
      %s148 = smul.addr %s142, 4
      %s149 = sadd.s32 %s147, %s148
      %s150 = smul.addr %s149, 4
      %s151 = scalar_lea.vmem %s1, %s150
      %p152 = scmp.lt.s32.totalorder %s17, 1
      %s153 = scalar_select %p152, %s17, 1
      %p154 = scmp.lt.s32.totalorder %s18, 0
      %s155 = scalar_select %p154, %s18, 0
      %p156 = scmp.lt.s32.totalorder %s19, 0
      %s157 = scalar_select %p156, %s19, 0
      %s158 = sadd.s32 %s157, %s155
      %s159 = smul.addr %s153, 4
      %s160 = sadd.s32 %s158, %s159
      %s161 = smul.addr %s160, 4
      %s162 = scalar_lea.vmem %s0, %s161
      %p163 = scmp.lt.s32.totalorder %s17, 1
      %s164 = scalar_select %p163, %s17, 1
      %p165 = scmp.lt.s32.totalorder %s18, 0
      %s166 = scalar_select %p165, %s18, 0
      %p167 = scmp.lt.s32.totalorder %s19, 0
      %s168 = scalar_select %p167, %s19, 0
      %s169 = sadd.s32 %s168, %s166
      %s170 = smul.addr %s164, 4
      %s171 = sadd.s32 %s169, %s170
      %s172 = smul.addr %s171, 4
      %s173 = scalar_lea.vmem %s1, %s172
      %v174 = vld [vmem:[%s162] sm:$0xf]
      %s175 = scalar_lea.vmem %s162, 4
      %v176 = vld [vmem:[%s175] sm:$0xf]
      %s177 = scalar_lea.vmem %s162, 8
      %v178 = vld [vmem:[%s177] sm:$0xf]
      %s179 = scalar_lea.vmem %s162, 12
      %v180 = vld [vmem:[%s179] sm:$0xf]
      %v181 = vadd.f32 %v174, %v176
      %v182 = vsub.f32 %v174, %v176
      %v183 = vadd.f32 %v178, %v180
      %v184 = vsub.f32 %v178, %v180
      %v185 = vadd.f32 %v181, %v183
      %v186 = vmul.f32 %v185, 0.25
      %vm187 = vcmask 519168
      %188 = vst.msk [vmem:[%s173] sm:$0xf] %vm187, %v186
      %v189 = vadd.f32 %v182, %v184
      %v190 = vmul.f32 %v189, 0.25
      %s191 = scalar_lea.vmem %s173, 4
      %192 = vst.msk [vmem:[%s191] sm:$0xf] %vm187, %v190
      %v193 = vsub.f32 %v181, %v183
      %v194 = vmul.f32 %v193, 0.25
      %s195 = scalar_lea.vmem %s173, 8
      %196 = vst.msk [vmem:[%s195] sm:$0xf] %vm187, %v194
      %v197 = vsub.f32 %v182, %v184
      %v198 = vmul.f32 %v197, 0.25
      %s199 = scalar_lea.vmem %s173, 12
      %200 = vst.msk [vmem:[%s199] sm:$0xf] %vm187, %v198
      %p201 = scmp.lt.s32.totalorder %s17, 1
      %s202 = scalar_select %p201, %s17, 1
      %p203 = scmp.lt.s32.totalorder %s18, 0
      %s204 = scalar_select %p203, %s18, 0
      %p205 = scmp.lt.s32.totalorder %s19, 0
      %s206 = scalar_select %p205, %s19, 0
      %s207 = sadd.s32 %s206, %s204
      %s208 = smul.addr %s202, 4
      %s209 = sadd.s32 %s207, %s208
      %s210 = smul.addr %s209, 4
      %s211 = scalar_lea.vmem %s1, %s210
      // Predicated region
      $region25: #{haar_downsampling_fwd.1} parent=23 // pred_check
        %p212 = pneg %p83
      $region26: #{haar_downsampling_fwd.1} parent=23 // pred_check_branch
        %214 = sbr.rel (%p212) target = $region28
      $region27: #{haar_downsampling_fwd.1} parent=23 // pred_region
        _
      $region28: #{haar_downsampling_fwd.1} parent=23 // pred_fallthru
        _
    $region24: #{haar_downsampling_fwd.1} parent=5 // pred_fallthru
      _
    %p215 = scmp.le.s32.totalorder 2, %s7
    // Predicated region
    $region29: #{haar_downsampling_fwd.1} parent=5 // pred_check
      %p216 = pneg %p215
    $region30: #{haar_downsampling_fwd.1} parent=5 // pred_check_branch
      %218 = sbr.rel (%p216) target = $region32
    $region31: #{haar_downsampling_fwd.1} parent=5 // pred_region
      %s219 = ssub.s32 %s7, 2
      // Predicated region
      $region33: #{haar_downsampling_fwd.1} parent=31 // pred_check
        %p220 = pneg %p89
      $region34: #{haar_downsampling_fwd.1} parent=31 // pred_check_branch
        %222 = sbr.rel (%p220) target = $region36
      $region35: #{haar_downsampling_fwd.1} parent=31 // pred_region
        %p223 = scmp.lt.s32.totalorder %s20, 1
        %s224 = scalar_select %p223, %s20, 1
        %p225 = scmp.lt.s32.totalorder %s21, 0
        %s226 = scalar_select %p225, %s21, 0
        %p227 = scmp.lt.s32.totalorder %s22, 0
        %s228 = scalar_select %p227, %s22, 0
        %s229 = sadd.s32 %s228, %s226
        %s230 = smul.addr %s224, 4
        %s231 = sadd.s32 %s229, %s230
        %s232 = smul.addr %s231, 4
        %s233 = scalar_lea.vmem %s1, %s232
      $region36: #{haar_downsampling_fwd.1} parent=31 // pred_fallthru
        _
    $region32: #{haar_downsampling_fwd.1} parent=5 // pred_fallthru
      _
  $region6: #{haar_downsampling_fwd.1} parent=0 // loop_footer
    %s11 = sadd.s32 1, %s7
  $region7: #{haar_downsampling_fwd.1} parent=0 // loop_footer_branch
    %6 = sbr.rel target = $region3
  $region8: #{haar_downsampling_fwd.1} parent=0 // loop_exit
    _

</llo_original>
